<compile_context>
chip_gen: v6e
topology: v6e:2x2x1
jax: 0.10.0
libtpu: 0.0.40
codegen_flags: <defaults>
</compile_context>

<pallas_src>
import numpy as np
import jax
import jax.numpy as jnp
from jax import lax
from jax.experimental import pallas as pl
from jax.experimental.pallas import tpu as pltpu

EPS = 1e-4  # torch.FloatTensor([0.0001])


# ----------------------------------------------------------------------------
# VMEM / tiling helpers
# ----------------------------------------------------------------------------
def _round_up(x, m):
    return ((x + m - 1) // m) * m


def _vmem_limit_bytes():
    try:
        cap = int(pltpu.get_tpu_info().vmem_capacity_bytes)
    except Exception:
        cap = 64 * 1024 * 1024          # conservative fallback (v7x per-core)
    return min((cap * 4) // 5, 100 * 1024 * 1024)


def _compiler_params():
    # Batch axis parallel (megacore shards batches, preserving w/rwt residency),
    # N-tile axis arbitrary.
    return pltpu.CompilerParams(
        dimension_semantics=("parallel", "arbitrary"),
        vmem_limit_bytes=_vmem_limit_bytes(),
    )


def _select_tiles(N, L, K, Kr):
    """Pick (TN, TL, N_pad): VMEM-aware lane tile TN (multiple of 128, prefer
    multiples of 256), in-kernel L-chunk TL for the online softmax, and the
    padded N so that N_pad % TN == 0."""
    # L-chunk for the online softmax (must divide L; full L when small)
    TL = L
    if L > 1024:
        for c in (1024, 512, 256):
            if L % c == 0:
                TL = c
                break
    budget = int(_vmem_limit_bytes() * 0.85)
    # resident, single-buffered operands: w (bf16), raw_w^T (bf16), row scales
    resident = L * K * 2 + Kr * L * 2 + 2 * L * 4
    # bytes per output column: streamed x (bf16, x2 buffers), cols out (f32, x2),
    # bf16 scores block (attn kernel input, x2), offsets, ~6 live (TL,) f32
    # temporaries of one online-softmax chunk.
    per_col = 2 * K * 2 + 2 * Kr * 4 + 2 * L * 2 + 2 * 4 + 6 * TL * 4
    avail = budget - resident
    if avail <= per_col * 128:
        # TODO(synk): L-tile the resident operands too (grid axis over L with
        # streamed w/rwt blocks) if even TN=128 does not fit.
        TN = 128
    else:
        TN = min(1024, avail // per_col)
        TN = (TN // 256) * 256 if TN >= 256 else 128
    TN = min(TN, max(128, _round_up(N, 128)))
    TN = max(128, (TN // 128) * 128)
    N_pad = _round_up(N, TN)
    return TN, TL, N_pad


# ----------------------------------------------------------------------------
# Buffered(1) residency (single-buffer the blocks whose index is constant over
# the N-tile axis).  Probe once; fall back cleanly if unsupported.
# ----------------------------------------------------------------------------
_BUFFERED1_OK = None


def _probe_copy_kernel(x_ref, o_ref):
    o_ref[...] = x_ref[...]


def _buffered1_supported():
    global _BUFFERED1_OK
    if _BUFFERED1_OK is None:
        try:
            out = pl.pallas_call(
                _probe_copy_kernel,
                out_shape=jax.ShapeDtypeStruct((8, 128), jnp.float32),
                grid=(1,),
                in_specs=[pl.BlockSpec((8, 128), lambda i: (0, 0),
                                       pipeline_mode=pl.Buffered(1))],
                out_specs=pl.BlockSpec((8, 128), lambda i: (0, 0)),
            )(jnp.zeros((8, 128), jnp.float32))
            jax.block_until_ready(out)
            _BUFFERED1_OK = True
        except Exception:
            _BUFFERED1_OK = False
    return _BUFFERED1_OK


def _resident_spec(shape, index_map):
    if _buffered1_supported():
        return pl.BlockSpec(shape, index_map, pipeline_mode=pl.Buffered(1))
    return pl.BlockSpec(shape, index_map)


# ----------------------------------------------------------------------------
# Shared in-kernel math: ONLINE (L-chunked) masked softmax over patches,
# first-occurrence argmax (pre-exp, monotone in the scaled scores), and the
# transposed-conv matmul accumulated with flash-style rescaling.
#
# Semantics match the torch module: masked rows have z == 0 exactly, they ARE
# part of the softmax denominator, but their probability is zeroed afterwards
# (yi = yi*mi) before the argmax and the deconv.
# ----------------------------------------------------------------------------
def _online_softmax_argmax_deconv(z_fn, valid_fn, rwt_fn, L, TL, TN, Kr):
    NEG_INIT = jnp.float32(-3.38e38)
    NEG_MASK = jnp.float32(-3.0e38)
    BIG = jnp.int32(1 << 30)
    n_chunks = L // TL

    m_run = jnp.full((1, TN), NEG_INIT, jnp.float32)   # running max over ALL rows
    l_run = jnp.zeros((1, TN), jnp.float32)            # running denominator
    acc = jnp.zeros((Kr, TN), jnp.float32)             # running rwt @ (e * mask)
    bv = jnp.full((1, TN), NEG_INIT, jnp.float32)      # best valid score
    bi = jnp.full((1, TN), BIG, jnp.int32)             # its (first-occurrence) index

    for li in range(n_chunks):                         # static unroll; TL chunks
        z = z_fn(li)                                   # (TL, TN) f32, masked rows == 0
        valid = valid_fn(li)                           # (TL, 1) bool
        rwt = rwt_fn(li)                               # (Kr, TL) bf16

        cmax = jnp.max(z, axis=0, keepdims=True)
        m_new = jnp.maximum(m_run, cmax)
        alpha = jnp.exp(m_run - m_new)
        e = jnp.exp(z - m_new)                         # all rows -> denominator
        l_run = alpha * l_run + jnp.sum(e, axis=0, keepdims=True)
        pm = jnp.where(valid, e, 0.0)                  # yi = yi * mi (numerator only)
        acc = alpha * acc + jnp.dot(rwt, pm.astype(rwt.dtype),
                                    preferred_element_type=jnp.float32)
        m_run = m_new

        # argmax over valid rows (monotone in z); first occurrence on ties.
        # TODO(synk): if profiling shows this XLU/VALU-bound, pack (score, ~idx)
        # into one key via pltpu.bitcast and use a single max reduction.
        mz = jnp.where(valid, z, NEG_MASK)
        cbv = jnp.max(mz, axis=0, keepdims=True)
        row = lax.broadcasted_iota(jnp.int32, z.shape, 0) + jnp.int32(li * TL)
        cand = jnp.where(jnp.logical_and(valid, mz == cbv), row, BIG)
        cbi = jnp.min(cand, axis=0, keepdims=True)
        upd = cbv > bv                                 # strict: keeps earliest chunk on ties
        bv = jnp.where(upd, cbv, bv)
        bi = jnp.where(upd, cbi, bi)

    cols = acc * pl.reciprocal(l_run, approx=True)     # divide after the matmul (Kr*TN ops)
    offs = jnp.where(bi >= jnp.int32(L), jnp.int32(0), bi)   # all-masked column -> 0
    return offs, cols


# ----------------------------------------------------------------------------
# Kernel 1 (fuse=True path): correlation matmul with output-side 1/||w|| row
# scaling; writes bf16 scores (halves the HBM round-trip of the fuse glue).
# ----------------------------------------------------------------------------
def _match_kernel(w_ref, x_ref, inv_ref, out_ref):
    acc = jnp.dot(w_ref[0], x_ref[0], preferred_element_type=jnp.float32)  # (L, TN)
    out_ref[0] = (acc * inv_ref[0]).astype(out_ref.dtype)


def match_scores(w_bf16, x_bf16, inv_norm, TN):
    B, L, K = w_bf16.shape
    Np = x_bf16.shape[2]
    return pl.pallas_call(
        _match_kernel,
        out_shape=jax.ShapeDtypeStruct((B, L, Np), jnp.bfloat16),
        grid=(B, Np // TN),
        in_specs=[
            _resident_spec((1, L, K), lambda b, t: (b, 0, 0)),
            pl.BlockSpec((1, K, TN), lambda b, t: (b, 0, t)),
            _resident_spec((1, L, 1), lambda b, t: (b, 0, 0)),
        ],
        out_specs=pl.BlockSpec((1, L, TN), lambda b, t: (b, 0, t)),
        compiler_params=_compiler_params(),
    )(w_bf16, x_bf16, inv_norm)


# ----------------------------------------------------------------------------
# Kernel 2 (fuse=True path): online softmax + argmax + deconv on fused scores.
# ----------------------------------------------------------------------------
def _make_attn_kernel(L, TL):
    def _attn_kernel(s_ref, ms_ref, rwt_ref, offs_ref, cols_ref):
        Kr = cols_ref.shape[1]
        TN = cols_ref.shape[2]

        def z_fn(li):
            sl = pl.ds(li * TL, TL)
            return s_ref[0, sl, :].astype(jnp.float32) * ms_ref[0, sl, :]

        def valid_fn(li):
            return ms_ref[0, pl.ds(li * TL, TL), :] > 0.0

        def rwt_fn(li):
            return rwt_ref[0, :, pl.ds(li * TL, TL)]

        offs, cols = _online_softmax_argmax_deconv(z_fn, valid_fn, rwt_fn, L, TL, TN, Kr)
        offs_ref[0] = offs
        cols_ref[0] = cols
    return _attn_kernel


def attn_and_cols(scores_bf16, m_scale, raw_w_t_bf16, TN, TL):
    B, L, Np = scores_bf16.shape
    Kr = raw_w_t_bf16.shape[1]
    return pl.pallas_call(
        _make_attn_kernel(L, TL),
        out_shape=(jax.ShapeDtypeStruct((B, 1, Np), jnp.int32),
                   jax.ShapeDtypeStruct((B, Kr, Np), jnp.float32)),
        grid=(B, Np // TN),
        in_specs=[pl.BlockSpec((1, L, TN), lambda b, t: (b, 0, t)),
                  _resident_spec((1, L, 1), lambda b, t: (b, 0, 0)),
                  _resident_spec((1, Kr, L), lambda b, t: (b, 0, 0))],
        out_specs=(pl.BlockSpec((1, 1, TN), lambda b, t: (b, 0, t)),
                   pl.BlockSpec((1, Kr, TN), lambda b, t: (b, 0, t))),
        compiler_params=_compiler_params(),
    )(scores_bf16, m_scale, raw_w_t_bf16)


# ----------------------------------------------------------------------------
# Fully fused kernel (fuse=False path): correlation matmul + online softmax +
# argmax + deconv in one pass; the (L, N) scores never leave VMEM and no
# (L, TN) temporaries are materialized.
# ----------------------------------------------------------------------------
def _make_fused_kernel(L, TL):
    def _fused_kernel(w_ref, x_ref, rs_ref, rwt_ref, offs_ref, cols_ref):
        Kr = cols_ref.shape[1]
        TN = cols_ref.shape[2]
        x = x_ref[0]                                   # (K, TN) bf16

        def z_fn(li):
            sl = pl.ds(li * TL, TL)
            d = jnp.dot(w_ref[0, sl, :], x, preferred_element_type=jnp.float32)
            return d * rs_ref[0, sl, :]                # row_scale = 1/||w|| * mm * scale

        def valid_fn(li):
            return rs_ref[0, pl.ds(li * TL, TL), :] > 0.0

        def rwt_fn(li):
            return rwt_ref[0, :, pl.ds(li * TL, TL)]

        offs, cols = _online_softmax_argmax_deconv(z_fn, valid_fn, rwt_fn, L, TL, TN, Kr)
        offs_ref[0] = offs
        cols_ref[0] = cols
    return _fused_kernel


def fused_match_attn(w_bf16, x_bf16, row_scale, raw_w_t_bf16, TN, TL):
    B, L, K = w_bf16.shape
    Np = x_bf16.shape[2]
    Kr = raw_w_t_bf16.shape[1]
    return pl.pallas_call(
        _make_fused_kernel(L, TL),
        out_shape=(jax.ShapeDtypeStruct((B, 1, Np), jnp.int32),
                   jax.ShapeDtypeStruct((B, Kr, Np), jnp.float32)),
        grid=(B, Np // TN),
        in_specs=[_resident_spec((1, L, K), lambda b, t: (b, 0, 0)),
                  pl.BlockSpec((1, K, TN), lambda b, t: (b, 0, t)),
                  _resident_spec((1, L, 1), lambda b, t: (b, 0, 0)),
                  _resident_spec((1, Kr, L), lambda b, t: (b, 0, 0))],
        out_specs=(pl.BlockSpec((1, 1, TN), lambda b, t: (b, 0, t)),
                   pl.BlockSpec((1, Kr, TN), lambda b, t: (b, 0, t))),
        compiler_params=_compiler_params(),
    )(w_bf16, x_bf16, row_scale, raw_w_t_bf16)


# ----------------------------------------------------------------------------
# Plain-JAX glue: patch extraction (nn.Unfold), fuse diag-convs, col2im.
# TODO(synk): generate x_cols inside the kernel with shifted loads of the
# (C, Hf, Wf) block and move the fuse diag-convs into a Pallas kernel to cut
# the remaining wrapper-side HBM traffic (dominant on v5e).
# ----------------------------------------------------------------------------
def _same_pad_per_side(size, k, stride, dilation):
    out = -(-size // stride)
    eff = (k - 1) * dilation + 1
    total = max(0, (out - 1) * stride + eff - size)
    assert total % 2 == 0, "asymmetric 'same' padding not supported in this test config"
    return total // 2


def _extract_patches_nchw(x, k, stride, dilation, pad):
    """nn.Unfold-equivalent; returns (B, L, C, k, k) with element order (c,kh,kw)."""
    xp = jnp.pad(x, ((0, 0), (0, 0), (pad, pad), (pad, pad)))
    B, C, H, W = xp.shape
    eff = dilation * (k - 1) + 1
    oh = (H - eff) // stride + 1
    ow = (W - eff) // stride + 1
    pieces = []
    for kh in range(k):
        for kw in range(k):
            pieces.append(xp[:, :,
                             kh * dilation: kh * dilation + stride * (oh - 1) + 1: stride,
                             kw * dilation: kw * dilation + stride * (ow - 1) + 1: stride])
    p = jnp.stack(pieces, axis=2)                  # (B, C, k*k, oh, ow)
    p = p.reshape(B, C, k, k, oh, ow)
    p = p.transpose(0, 4, 5, 1, 2, 3).reshape(B, oh * ow, C, k, k)
    return p


def _diag_conv(y, k):
    """conv2d with an identity (eye(k)) kernel, stride 1, 'same' padding."""
    A, Bn = y.shape
    pad = (k - 1) // 2
    p = jnp.pad(y, ((pad, pad), (pad, pad)))
    out = jnp.zeros_like(y)
    for d in range(k):
        out = out + p[d:d + A, d:d + Bn]
    return out


def _fuse_scores(s, bh, bw, fh, fw, k):
    # fuse step: propagate attention along diagonals in (bh,fh) then (bw,fw).
    y = _diag_conv(s, k)
    y = y.reshape(bh, bw, fh, fw).transpose(1, 0, 3, 2).reshape(bw * bh, fw * fh)
    y = _diag_conv(y, k)
    y = y.reshape(bw, bh, fw, fh).transpose(1, 0, 3, 2).reshape(bh * bw, fh * fw)
    return y


def _col2im_overlap_add(cols, B, C, kr, rate, Hf, Wf):
    """Overlap-add of the deconv columns.  Decompose kh = qh*rate + rh (and
    similarly kw): each of the 4 (qh,qw) quadrants interleaves into a dense
    (Hf*rate, Wf*rate) slab -> 4 padded adds instead of kr*kr scatter updates."""
    cols_r = cols.reshape(B, C, 2, rate, 2, rate, Hf, Wf)  # (B,C,qh,rh,qw,rw,iy,ix)
    quads = []
    for qh in range(2):
        for qw in range(2):
            q = cols_r[:, :, qh, :, qw, :, :, :]           # (B, C, rh, rw, iy, ix)
            q = q.transpose(0, 1, 4, 2, 5, 3).reshape(B, C, Hf * rate, Wf * rate)
            quads.append(jnp.pad(q, ((0, 0), (0, 0),
                                     (qh * rate, rate - qh * rate),
                                     (qw * rate, rate - qw * rate))))
    out_full = quads[0] + quads[1] + quads[2] + quads[3]   # (B, C, Hf*rate+rate, ...)
    return out_full[:, :, 1:-1, 1:-1] / 4.0                # conv_transpose pad=1, /4


# ----------------------------------------------------------------------------
# Flow visualisation (pure NumPy in the original torch module -> kept on host).
# ----------------------------------------------------------------------------
def make_color_wheel():
    RY, YG, GC, CB, BM, MR = (15, 6, 4, 11, 13, 6)
    ncols = RY + YG + GC + CB + BM + MR
    colorwheel = np.zeros([ncols, 3])
    col = 0
    colorwheel[0:RY, 0] = 255
    colorwheel[0:RY, 1] = np.floor(255 * np.arange(0, RY) / RY)
    col += RY
    colorwheel[col:col + YG, 0] = 255 - np.floor(255 * np.arange(0, YG) / YG)
    colorwheel[col:col + YG, 1] = 255
    col += YG
    colorwheel[col:col + GC, 1] = 255
    colorwheel[col:col + GC, 2] = np.floor(255 * np.arange(0, GC) / GC)
    col += GC
    colorwheel[col:col + CB, 1] = 255 - np.floor(255 * np.arange(0, CB) / CB)
    colorwheel[col:col + CB, 2] = 255
    col += CB
    colorwheel[col:col + BM, 2] = 255
    colorwheel[col:col + BM, 0] = np.floor(255 * np.arange(0, BM) / BM)
    col += BM
    colorwheel[col:col + MR, 2] = 255 - np.floor(255 * np.arange(0, MR) / MR)
    colorwheel[col:col + MR, 0] = 255
    return colorwheel


def compute_color(u, v):
    h, w = u.shape
    img = np.zeros([h, w, 3])
    nanIdx = np.isnan(u) | np.isnan(v)
    u[nanIdx] = 0
    v[nanIdx] = 0
    colorwheel = make_color_wheel()
    ncols = np.size(colorwheel, 0)
    rad = np.sqrt(u ** 2 + v ** 2)
    a = np.arctan2(-v, -u) / np.pi
    fk = (a + 1) / 2 * (ncols - 1) + 1
    k0 = np.floor(fk).astype(int)
    k1 = k0 + 1
    k1[k1 == ncols + 1] = 1
    f = fk - k0
    for i in range(np.size(colorwheel, 1)):
        tmp = colorwheel[:, i]
        col0 = tmp[k0 - 1] / 255
        col1 = tmp[k1 - 1] / 255
        col = (1 - f) * col0 + f * col1
        idx = rad <= 1
        col[idx] = 1 - rad[idx] * (1 - col[idx])
        notidx = np.logical_not(idx)
        col[notidx] *= 0.75
        img[:, :, i] = np.uint8(np.floor(255 * col * (1 - nanIdx)))
    return img


def flow_to_image(flow):
    flow = np.array(flow, dtype=np.float64, copy=True)
    out = []
    maxu, maxv, minu, minv = -999.0, -999.0, 999.0, 999.0
    maxrad = -1
    for i in range(flow.shape[0]):
        u = flow[i, :, :, 0]
        v = flow[i, :, :, 1]
        idxunknow = (abs(u) > 10000000.0) | (abs(v) > 10000000.0)
        u[idxunknow] = 0
        v[idxunknow] = 0
        maxu = max(maxu, np.max(u)); minu = min(minu, np.min(u))
        maxv = max(maxv, np.max(v)); minv = min(minv, np.min(v))
        rad = np.sqrt(u ** 2 + v ** 2)
        maxrad = max(maxrad, np.max(rad))
        u = u / (maxrad + np.finfo(float).eps)
        v = v / (maxrad + np.finfo(float).eps)
        out.append(compute_color(u, v))
    return np.float32(np.uint8(out))


# ----------------------------------------------------------------------------
# ContextualAttention forward (Pallas-backed).
# ----------------------------------------------------------------------------
class ContextualAttentionPallas:
    def __init__(self, ksize=3, stride=1, rate=2, dilation=1, fuse_k=3,
                 softmax_scale=10.0, fuse=True):
        self.ksize = ksize
        self.stride = stride
        self.rate = rate
        self.dilation = dilation
        self.fuse_k = fuse_k
        self.softmax_scale = softmax_scale
        self.fuse = fuse

    def forward(self, b, f, mask=None):
        B, C, H, W = f.shape
        kr = 2 * self.rate

        # raw 4x4 patches from full-resolution background (stride = rate)
        pad_raw = _same_pad_per_side(b.shape[2], kr, self.rate * self.stride, self.dilation)
        raw_w = _extract_patches_nchw(b, kr, self.rate * self.stride, self.dilation, pad_raw)
        Lraw = raw_w.shape[1]
        raw_w_t = jnp.transpose(raw_w.reshape(B, Lraw, -1), (0, 2, 1))   # (B, C*kr*kr, Lraw)

        # nearest downsample by 1/rate  (F.interpolate nearest, integer rate)
        f_s = f[:, :, ::self.rate, ::self.rate]
        b_s = b[:, :, ::self.rate, ::self.rate]
        Bf, Cf, Hf, Wf = f_s.shape
        Bb, Cb, Hb, Wb = b_s.shape

        # ksize x ksize matching patches from downsampled background
        pad_w = _same_pad_per_side(Hb, self.ksize, self.stride, 1)
        w = _extract_patches_nchw(b_s, self.ksize, self.stride, 1, pad_w)  # (B, L, C, ks, ks)
        L = w.shape[1]
        assert L == Lraw
        w_flat = w.reshape(B, L, -1)

        # mask -> per-patch validity mm (== 1.0 mean, as in the torch code)
        if mask is None:
            mask_s = jnp.zeros((Bf, 1, Hf, Wf), jnp.float32)
        else:
            mask_scale = mask.shape[3] // Wf
            mask_s = mask[:, :, ::mask_scale, ::mask_scale]
        m_pat = _extract_patches_nchw(
            mask_s, self.ksize, self.stride, 1,
            _same_pad_per_side(mask_s.shape[2], self.ksize, self.stride, 1))
        mm = (jnp.mean(m_pat, axis=(2, 3, 4)) == 1.0).astype(jnp.float32)  # (B, L)

        # im2col of downsampled foreground ('same' padding, stride 1)
        pad_x = _same_pad_per_side(Hf, self.ksize, 1, 1)
        x_pat = _extract_patches_nchw(f_s, self.ksize, 1, 1, pad_x)        # (B, N, C, ks, ks)
        N = x_pat.shape[1]
        x_cols = jnp.transpose(x_pat.reshape(B, N, -1), (0, 2, 1))         # (B, C*ks*ks, N)
        K = x_cols.shape[1]
        Kr = raw_w_t.shape[1]

        # lane-dense, VMEM-aware tiling; pad N with zero columns (sliced off)
        TN, TL, Np = _select_tiles(N, L, K, Kr)
        if Np > N:
            x_cols = jnp.pad(x_cols, ((0, 0), (0, 0), (0, Np - N)))

        # bf16 MXU operands + exact f32 per-row scales (output-side scaling)
        # wi_norm = sqrt(sum(wi^2 + EPS))  (EPS added per element, as in torch)
        inv_norm = lax.rsqrt(jnp.sum(w_flat * w_flat + EPS, axis=2, keepdims=True))
        w_bf16 = w_flat.astype(jnp.bfloat16)
        x_bf16 = x_cols.astype(jnp.bfloat16)
        rwt_bf16 = raw_w_t.astype(jnp.bfloat16)
        mm3 = mm[:, :, None]                                               # (B, L, 1)
        scale = float(self.softmax_scale)

        if self.fuse:
            # --- kernel 1: normalised correlation scores (bf16 out) -----------
            scores = match_scores(w_bf16, x_bf16, inv_norm, TN)            # (B, L, Np) bf16
            scores = scores[:, :, :N]
            # fuse: two identity-kernel (diagonal) convs over the full (L, N)
            # matrix incl. a transposed view -> stays as bf16 JAX shift-adds.
            scores = jax.vmap(
                lambda s: _fuse_scores(s, Hb, Wb, Hf, Wf, self.fuse_k))(scores)
            if Np > N:
                scores = jnp.pad(scores, ((0, 0), (0, 0), (0, Np - N)))
            # mask * softmax_scale folded into one per-row vector
            m_scale = (mm3 * scale).astype(jnp.float32)
            # --- kernel 2: online softmax + argmax + deconv matmul -------------
            offs, cols = attn_and_cols(scores, m_scale, rwt_bf16, TN, TL)
        else:
            # single fused kernel: scores never touch HBM.  Row scale folds the
            # normaliser, the patch-validity mask and the softmax scale.
            row_scale = (inv_norm * mm3 * scale).astype(jnp.float32)
            offs, cols = fused_match_attn(w_bf16, x_bf16, row_scale, rwt_bf16, TN, TL)

        offs = offs[:, :, :N]
        cols = cols[:, :, :N]

        # col2im (overlap-add) for conv_transpose2d(stride=rate, padding=1) / 4
        y = _col2im_overlap_add(cols, B, C, kr, self.rate, Hf, Wf)          # (B, C, H, W)

        # offsets -> (row, col) indices, relative to reference coordinates
        offs = offs.reshape(B, 1, Hf, Wf)
        b_shape = [Bb, Cb, Hb, Wb]
        f_shape = [Bf, Cf, Hf, Wf]
        if b_shape != f_shape:
            times = float(Hf * Wf) / float(Hb * Wb)
            offs = (((offs + 1).astype(jnp.float32)) * times - 1).astype(jnp.int32)
        # matches the torch code: cat([offset // f_shape[3], offset % b_shape[3]])
        offsets = jnp.concatenate([offs // Wf, offs % Wb], axis=1)          # (B, 2, Hf, Wf)
        h_add = jnp.broadcast_to(jnp.arange(Hf, dtype=jnp.int32).reshape(1, 1, Hf, 1),
                                 (B, 1, Hf, Wf))
        w_add = jnp.broadcast_to(jnp.arange(Wf, dtype=jnp.int32).reshape(1, 1, 1, Wf),
                                 (B, 1, Hf, Wf))
        offsets = offsets - jnp.concatenate([h_add, w_add], axis=1)

        # flow visualisation: pure NumPy host code in the original module
        flow_np = flow_to_image(np.array(jax.device_get(jnp.transpose(offsets, (0, 2, 3, 1))),
                                         dtype=np.int64))
        flow = jnp.asarray(flow_np, jnp.float32) / 255.0
        flow = jnp.transpose(flow, (0, 3, 1, 2))
        if self.rate != 1:
            up = self.rate * 4
            flow = jnp.repeat(jnp.repeat(flow, up, axis=2), up, axis=3)
        return y, flow


if __name__ == "__main__":
    B, C, H, W = 2, 4, 16, 16
    key = jax.random.PRNGKey(0)
    kb, kf = jax.random.split(key)
    b = jax.random.normal(kb, (B, C, H, W), dtype=jnp.float32)
    f = jax.random.normal(kf, (B, C, H, W), dtype=jnp.float32)
    # all-ones mask -> interior patches pass the (mean == 1.0) test, so the
    # attention / softmax path is fully exercised (border patches masked).
    mask = jnp.ones((B, 1, H, W), dtype=jnp.float32)

    # fuse=True path: matmul kernel -> diag-conv fuse (bf16 JAX glue) -> attn kernel
    ca = ContextualAttentionPallas(ksize=3, stride=1, rate=2, dilation=1,
                                   fuse_k=3, softmax_scale=10.0, fuse=True)
    y, flow = ca.forward(b, f, mask=mask)
    y = jax.block_until_ready(y)
    flow = jax.block_until_ready(flow)
    assert y.shape == (B, C, H, W), y.shape
    assert flow.shape == (B, 3, H * 4, W * 4), flow.shape
    assert bool(jnp.isfinite(y).all())

    # fuse=False path: single fully-fused Pallas kernel (scores stay in VMEM)
    ca_nf = ContextualAttentionPallas(ksize=3, stride=1, rate=2, dilation=1,
                                      fuse_k=3, softmax_scale=10.0, fuse=False)
    y2, flow2 = ca_nf.forward(b, f, mask=mask)
    y2 = jax.block_until_ready(y2)
    flow2 = jax.block_until_ready(flow2)
    assert y2.shape == (B, C, H, W), y2.shape
    assert flow2.shape == (B, 3, H * 4, W * 4), flow2.shape
    assert bool(jnp.isfinite(y2).all())

    print("KERNEL_OK")
</pallas_src>

<mosaic_0001>
module attributes {stable_mosaic.version = 11 : i64} {
  func.func @_probe_copy_kernel(%arg0: i32, %arg1: memref<8x128xf32, #tpu.memory_space<vmem>>, %arg2: memref<8x128xf32, #tpu.memory_space<vmem>>) attributes {dimension_semantics = [#tpu.dimension_semantics<arbitrary>], iteration_bounds = array<i64: 1>, scalar_prefetch = 0 : i64, scratch_operands = 0 : i64, tpu.core_type = #tpu.core_type<tc>, window_params = [{pipeline_mode = #tpu.pipeline_mode<synchronous>, transform_indices = @transform_0, window_bounds = array<i64: 8, 128>}, {pipeline_mode = #tpu.pipeline_mode<synchronous>, transform_indices = @transform_1, window_bounds = array<i64: 8, 128>}]} {
    %c0 = arith.constant 0 : index
    %c0_0 = arith.constant 0 : index
    %0 = vector.load %arg1[%c0, %c0_0] : memref<8x128xf32, #tpu.memory_space<vmem>>, vector<8x128xf32>
    %c0_1 = arith.constant 0 : index
    %c0_2 = arith.constant 0 : index
    %1 = vector.load %arg2[%c0_1, %c0_2] : memref<8x128xf32, #tpu.memory_space<vmem>>, vector<8x128xf32>
    tpu.vector_store %arg2[%c0_1, %c0_2], %0 {strides = array<i32>} : memref<8x128xf32, #tpu.memory_space<vmem>>, vector<8x128xf32>,
    return
  }
  func.func @transform_0(%arg0: i32) -> (i32, i32) {
    %c0_i32 = arith.constant 0 : i32
    %c0_i32_0 = arith.constant 0 : i32
    %c0_i32_1 = arith.constant 0 : i32
    return %c0_i32, %c0_i32_0 : i32, i32
  }
  func.func @transform_1(%arg0: i32) -> (i32, i32) {
    %c0_i32 = arith.constant 0 : i32
    %c0_i32_0 = arith.constant 0 : i32
    %c0_i32_1 = arith.constant 0 : i32
    return %c0_i32, %c0_i32_0 : i32, i32
  }
}

module attributes {stable_mosaic.version = 11 : i64} {
  func.func @_match_kernel(%arg0: i32, %arg1: i32, %arg2: memref<1x64x36xbf16, #tpu.memory_space<vmem>>, %arg3: memref<1x36x128xbf16, #tpu.memory_space<vmem>>, %arg4: memref<1x64x1xf32, #tpu.memory_space<vmem>>, %arg5: memref<1x64x128xbf16, #tpu.memory_space<vmem>>) attributes {dimension_semantics = [#tpu.dimension_semantics<parallel>, #tpu.dimension_semantics<arbitrary>], iteration_bounds = array<i64: 2, 1>, scalar_prefetch = 0 : i64, scratch_operands = 0 : i64, tpu.core_type = #tpu.core_type<tc>, window_params = [{transform_indices = @transform_0, window_bounds = array<i64: 1, 64, 36>}, {transform_indices = @transform_1, window_bounds = array<i64: 1, 36, 128>}, {transform_indices = @transform_2, window_bounds = array<i64: 1, 64, 1>}, {transform_indices = @transform_3, window_bounds = array<i64: 1, 64, 128>}]} {
    %c0 = arith.constant 0 : index
    %c0_0 = arith.constant 0 : index
    %c0_1 = arith.constant 0 : index
    %0 = vector.load %arg2[%c0, %c0_0, %c0_1] : memref<1x64x36xbf16, #tpu.memory_space<vmem>>, vector<1x64x36xbf16>
    %1 = vector.shape_cast %0 : vector<1x64x36xbf16> to vector<64x36xbf16>
    %c0_2 = arith.constant 0 : index
    %c0_3 = arith.constant 0 : index
    %c0_4 = arith.constant 0 : index
    %2 = vector.load %arg3[%c0_2, %c0_3, %c0_4] : memref<1x36x128xbf16, #tpu.memory_space<vmem>>, vector<1x36x128xbf16>
    %3 = vector.shape_cast %2 : vector<1x36x128xbf16> to vector<36x128xbf16>
    %cst = arith.constant dense<0.000000e+00> : vector<64x128xf32>
    %4 = tpu.matmul %1, %3, %cst {dimension_numbers = #tpu.dot_dimension_numbers<[1], [0], [0], [1], [0, 0, 1, 1], [], []>} : vector<64x36xbf16>, vector<36x128xbf16>, vector<64x128xf32> -> vector<64x128xf32>
    %c0_5 = arith.constant 0 : index
    %c0_6 = arith.constant 0 : index
    %c0_7 = arith.constant 0 : index
    %5 = vector.load %arg4[%c0_5, %c0_6, %c0_7] : memref<1x64x1xf32, #tpu.memory_space<vmem>>, vector<1x64x1xf32>
    %6 = vector.shape_cast %5 : vector<1x64x1xf32> to vector<64x1xf32>
    %7 = vector.broadcast %6 : vector<64x1xf32> to vector<64x128xf32>
    %8 = arith.mulf %4, %7 : vector<64x128xf32>
    %9 = arith.truncf %8 : vector<64x128xf32> to vector<64x128xbf16>
    %c0_8 = arith.constant 0 : index
    %c0_9 = arith.constant 0 : index
    %c0_10 = arith.constant 0 : index
    %10 = vector.load %arg5[%c0_8, %c0_9, %c0_10] : memref<1x64x128xbf16, #tpu.memory_space<vmem>>, vector<1x64x128xbf16>
    %11 = vector.shape_cast %10 : vector<1x64x128xbf16> to vector<64x128xbf16>
    %12 = vector.shape_cast %9 : vector<64x128xbf16> to vector<1x64x128xbf16>
    tpu.vector_store %arg5[%c0_8, %c0_9, %c0_10], %12 {strides = array<i32>} : memref<1x64x128xbf16, #tpu.memory_space<vmem>>, vector<1x64x128xbf16>,
    return
  }
  func.func @transform_0(%arg0: i32, %arg1: i32) -> (i32, i32, i32) {
    %c0_i32 = arith.constant 0 : i32
    %c0_i32_0 = arith.constant 0 : i32
    %c0_i32_1 = arith.constant 0 : i32
    return %arg0, %c0_i32, %c0_i32_0 : i32, i32, i32
  }
  func.func @transform_1(%arg0: i32, %arg1: i32) -> (i32, i32, i32) {
    %c0_i32 = arith.constant 0 : i32
    %c0_i32_0 = arith.constant 0 : i32
    return %arg0, %c0_i32, %arg1 : i32, i32, i32
  }
  func.func @transform_2(%arg0: i32, %arg1: i32) -> (i32, i32, i32) {
    %c0_i32 = arith.constant 0 : i32
    %c0_i32_0 = arith.constant 0 : i32
    %c0_i32_1 = arith.constant 0 : i32
    return %arg0, %c0_i32, %c0_i32_0 : i32, i32, i32
  }
  func.func @transform_3(%arg0: i32, %arg1: i32) -> (i32, i32, i32) {
    %c0_i32 = arith.constant 0 : i32
    %c0_i32_0 = arith.constant 0 : i32
    return %arg0, %c0_i32, %arg1 : i32, i32, i32
  }
}

</mosaic_0001>

<llo_original>
// kernel: tpu_custom_call.1
$region0: #{tpu_custom_call.1}
  #allocation0 [shape = 'u32[]', space=smem, size = 0x4, offset = 0x4, fixed_abs, tag = 'smem constant byte address 0x4 - core index']
  #allocation1 [shape = 'u32[144,128]{1,0:T(1,128)}', space=vmem, size = 0x12000, scoped, tag = 'internal scratch']
  %s0 = inlined_call_operand.hbm [shape: f32[8,128], index: 0, kind: input, shape index: {}]
  %s1 = inlined_call_operand.hbm [shape: f32[8,128], index: 1, kind: output, shape index: {}]
  %s2 = sld [smem:[#allocation0]]
  $region18: #{tpu_custom_call.1} parent=0
    _
  %s4 = ssub.s32 1, %s2
  %s5 = scalar_select 0, %s4, %s2
  $region1: #{tpu_custom_call.1} parent=0
    #allocation2 [shape = 'u8[4096]{0}', space=vmem, size = 0x1000, scoped, tag = 'input window, operand 0, single buffered']
    #allocation3 [shape = 's32[1]{0}', space=sflag, size = 0x4, scoped, tag = 'scoped memory for tpu_custom_call.1']
    #allocation4 [shape = 's32[1]{0}', space=sflag, size = 0x4, scoped, tag = 'scoped memory for tpu_custom_call.1']
    #allocation5 [shape = 'u8[4096]{0}', space=vmem, size = 0x1000, scoped, tag = 'output window, operand 0, single buffered']
    %6 = vsyncpa [#allocation3], 0
    %7 = vsyncpa [#allocation4], 0
    // Predicated region
    $region2: #{tpu_custom_call.1} parent=1 // pred_check
      _
    $region3: #{tpu_custom_call.1} parent=1 // pred_check_branch
      %9 = sbr.rel (0) target = $region5
    $region4: #{tpu_custom_call.1} parent=1 // pred_region
      %s11 = ssub.s32 128, 128
      %12 = vsyncadd [#allocation3], %s11
      %s14 = sshll.u32 [#allocation2], 4
      %s15 = int_to_ptr.vmem [resolvable:$true] %s14
      %17 = dma.hbm_to_vmem [thread:$0]  %s0, 128, %s15, [#allocation3]
    $region5: #{tpu_custom_call.1} parent=1 // pred_fallthru
      _
    // Predicated region
    $region6: #{tpu_custom_call.1} parent=1 // pred_check
      _
    $region7: #{tpu_custom_call.1} parent=1 // pred_check_branch
      %19 = sbr.rel (0) target = $region9
    $region8: #{tpu_custom_call.1} parent=1 // pred_region
      %20 = dma.done [#allocation3], 128
    $region9: #{tpu_custom_call.1} parent=1 // pred_fallthru
      _
    %v21 = vld [vmem:[#allocation2] sm:$0xff]
    %22 = vst [vmem:[#allocation5] sm:$0xff] %v21
    // Predicated region
    $region10: #{tpu_custom_call.1} parent=1 // pred_check
      _
    $region11: #{tpu_custom_call.1} parent=1 // pred_check_branch
      %24 = sbr.rel (0) target = $region13
    $region12: #{tpu_custom_call.1} parent=1 // pred_region
      %s26 = ssub.s32 128, 128
      %27 = vsyncadd [#allocation4], %s26
      %s29 = sshll.u32 [#allocation5], 4
      %s30 = int_to_ptr.vmem [resolvable:$true] %s29
      %32 = dma.vmem_to_hbm [thread:$0]  %s30, 128, %s1, [#allocation4]
    $region13: #{tpu_custom_call.1} parent=1 // pred_fallthru
      _
    // Predicated region
    $region14: #{tpu_custom_call.1} parent=1 // pred_check
      _
    $region15: #{tpu_custom_call.1} parent=1 // pred_check_branch
      %34 = sbr.rel (0) target = $region17
    $region16: #{tpu_custom_call.1} parent=1 // pred_region
      %35 = dma.done [#allocation4], 128
    $region17: #{tpu_custom_call.1} parent=1 // pred_fallthru
      _
    %36 = vsyncpa [#allocation3], 1
    %37 = vsyncpa [#allocation4], 1

// kernel: tpu_custom_call.1
$region0: #{tpu_custom_call.1}
  #allocation0 [shape = 'u32[]', space=smem, size = 0x4, offset = 0x4, fixed_abs, tag = 'smem constant byte address 0x4 - core index']
  #allocation1 [shape = 'u32[144,128]{1,0:T(1,128)}', space=vmem, size = 0x12000, scoped, tag = 'internal scratch']
  %s0 = inlined_call_operand.vmem [shape: bf16[2,64,36], index: 0, kind: input, shape index: {}]
  %s1 = inlined_call_operand.vmem [shape: bf16[2,36,128], index: 1, kind: input, shape index: {}]
  %s2 = inlined_call_operand.vmem [shape: f32[2,64,1], index: 2, kind: input, shape index: {}]
  %s3 = inlined_call_operand.hbm [shape: bf16[2,64,128], index: 3, kind: output, shape index: {}]
  %s4 = sld [smem:[#allocation0]]
  $region45: #{tpu_custom_call.1} parent=0
    _
  %s6 = ssub.s32 1, %s4
  %s7 = scalar_select 0, %s6, %s4
  $region1: #{tpu_custom_call.1} parent=0
    #allocation2 [shape = 'u8[32768]{0}', space=vmem, size = 0x8000, scoped, tag = 'output window, operand 0']
    #allocation3 [shape = 's32[2]{0}', space=sflag, size = 0x8, scoped, tag = 'scoped memory for tpu_custom_call.1']
    %8 = vsyncpa [#allocation3], 0
    %s9 = scalar_lea.sflag [#allocation3], 1
    %10 = vsyncpa %s9, 0
    loop: start=0, step=1, limit=4
    $region2: #{tpu_custom_call.1} parent=1 // loop_pre_header
      _
    $region3: #{tpu_custom_call.1} parent=1 // loop_header
      %s12 = sphi 0, %s16
      %p13 = scmp.ge.s32.totalorder %s12, 4
      %s19 = sphi 0, %s31
      %s20 = sphi 0, %s27
      %s21 = sphi 0, %s19
      %s22 = sphi 0, %s20
      %s23 = sphi 0, %s21
      %s24 = sphi 0, %s22
      %s34 = sphi 0, %s36
      %s37 = sphi 0, %s34
      %s38 = sphi 0, %s37
      %s54 = sphi 0, %s38
      %s62 = sphi 0, %s64
      %s65 = sphi 0, %s62
      %s66 = sphi 0, %s65
      %s82 = sphi 0, %s66
      %s88 = sphi 0, %s90
      %s91 = sphi 0, %s88
      %s92 = sphi 0, %s91
      %s108 = sphi 0, %s92
      %s116 = sphi 0, %s118
      %s119 = sphi 0, %s116
      %s120 = sphi 0, %s119
      %s136 = sphi 0, %s120
    $region4: #{tpu_custom_call.1} parent=1 // loop_header_branch
      %15 = sbr.rel (%p13) target = $region8
    $region5: #{tpu_custom_call.1} parent=1 // loop_body
      %s17 = ssub.s32 %s12, 1
      %s18 = ssub.s32 %s12, 2
      %s25 = sadd.s32 1, %s20
      %p26 = scmp.ge.s32.totalorder %s25, 1
      %s27 = scalar_select %p26, 0, %s25
      %s28 = sadd.s32 1, %s19
      %s29 = scalar_select %p26, %s28, %s19
      %p30 = scmp.ge.s32.totalorder %s29, 2
      %s31 = scalar_select %p30, 0, %s29
      %s32 = ssub.s32 %s19, %s31
      %p33 = scmp.eq.s32.totalorder %s32, 0
      %s35 = sadd.s32 %s34, 1
      %s36 = scalar_select %p33, %s34, %s35
      %p39 = pneg %p33
      %p40 = scmp.eq.s32.totalorder %s12, 1
      %p41 = por %p39, %p40
      %p42 = scmp.ne.s32.totalorder %s34, %s37
      %p43 = scmp.eq.s32.totalorder %s12, 0
      %p44 = por %p42, %p43
      %p45 = scmp.ne.s32.totalorder %s34, %s37
      %p46 = scmp.eq.s32.totalorder %s17, 1
      %p47 = por %p45, %p46
      %p48 = scmp.ne.s32.totalorder %s37, %s38
      %p49 = scmp.eq.s32.totalorder %s17, 0
      %p50 = por %p48, %p49
      %p51 = scmp.ne.s32.totalorder %s37, %s38
      %p52 = scmp.eq.s32.totalorder %s18, 1
      %p53 = por %p51, %p52
      %p55 = scmp.ne.s32.totalorder %s38, %s54
      %p56 = scmp.eq.s32.totalorder %s18, 0
      %p57 = por %p55, %p56
      %s58 = ssub.s32 %s19, %s31
      %s59 = ssub.s32 %s20, %s27
      %s60 = sor.u32 %s58, %s59
      %p61 = scmp.eq.s32.totalorder %s60, 0
      %s63 = sadd.s32 %s62, 1
      %s64 = scalar_select %p61, %s62, %s63
      %p67 = pneg %p61
      %p68 = scmp.eq.s32.totalorder %s12, 1
      %p69 = por %p67, %p68
      %p70 = scmp.ne.s32.totalorder %s62, %s65
      %p71 = scmp.eq.s32.totalorder %s12, 0
      %p72 = por %p70, %p71
      %p73 = scmp.ne.s32.totalorder %s62, %s65
      %p74 = scmp.eq.s32.totalorder %s17, 1
      %p75 = por %p73, %p74
      %p76 = scmp.ne.s32.totalorder %s65, %s66
      %p77 = scmp.eq.s32.totalorder %s17, 0
      %p78 = por %p76, %p77
      %p79 = scmp.ne.s32.totalorder %s65, %s66
      %p80 = scmp.eq.s32.totalorder %s18, 1
      %p81 = por %p79, %p80
      %p83 = scmp.ne.s32.totalorder %s66, %s82
      %p84 = scmp.eq.s32.totalorder %s18, 0
      %p85 = por %p83, %p84
      %s86 = ssub.s32 %s19, %s31
      %p87 = scmp.eq.s32.totalorder %s86, 0
      %s89 = sadd.s32 %s88, 1
      %s90 = scalar_select %p87, %s88, %s89
      %p93 = pneg %p87
      %p94 = scmp.eq.s32.totalorder %s12, 1
      %p95 = por %p93, %p94
      %p96 = scmp.ne.s32.totalorder %s88, %s91
      %p97 = scmp.eq.s32.totalorder %s12, 0
      %p98 = por %p96, %p97
      %p99 = scmp.ne.s32.totalorder %s88, %s91
      %p100 = scmp.eq.s32.totalorder %s17, 1
      %p101 = por %p99, %p100
      %p102 = scmp.ne.s32.totalorder %s91, %s92
      %p103 = scmp.eq.s32.totalorder %s17, 0
      %p104 = por %p102, %p103
      %p105 = scmp.ne.s32.totalorder %s91, %s92
      %p106 = scmp.eq.s32.totalorder %s18, 1
      %p107 = por %p105, %p106
      %p109 = scmp.ne.s32.totalorder %s92, %s108
      %p110 = scmp.eq.s32.totalorder %s18, 0
      %p111 = por %p109, %p110
      %s112 = ssub.s32 %s19, %s31
      %s113 = ssub.s32 %s20, %s27
      %s114 = sor.u32 %s112, %s113
      %p115 = scmp.eq.s32.totalorder %s114, 0
      %s117 = sadd.s32 %s116, 1
      %s118 = scalar_select %p115, %s116, %s117
      %p121 = pneg %p115
      %p122 = scmp.eq.s32.totalorder %s12, 1
      %p123 = por %p121, %p122
      %p124 = scmp.ne.s32.totalorder %s116, %s119
      %p125 = scmp.eq.s32.totalorder %s12, 0
      %p126 = por %p124, %p125
      %p127 = scmp.ne.s32.totalorder %s116, %s119
      %p128 = scmp.eq.s32.totalorder %s17, 1
      %p129 = por %p127, %p128
      %p130 = scmp.ne.s32.totalorder %s119, %s120
      %p131 = scmp.eq.s32.totalorder %s17, 0
      %p132 = por %p130, %p131
      %p133 = scmp.ne.s32.totalorder %s119, %s120
      %p134 = scmp.eq.s32.totalorder %s18, 1
      %p135 = por %p133, %p134
      %p137 = scmp.ne.s32.totalorder %s120, %s136
      %p138 = scmp.eq.s32.totalorder %s18, 0
      %p139 = por %p137, %p138
      %p140 = scmp.le.s32.totalorder 1, %s12
      %p141 = scmp.lt.s32.totalorder %s12, 3
      %p142 = pnand %p140, %p141
      %p143 = pneg %p142
      // Predicated region
      $region9: #{tpu_custom_call.1} parent=5 // pred_check
        _
      $region10: #{tpu_custom_call.1} parent=5 // pred_check_branch
        %145 = sbr.rel (%p142) target = $region12
      $region11: #{tpu_custom_call.1} parent=5 // pred_region
        %s146 = ssub.s32 %s12, 1
      $region12: #{tpu_custom_call.1} parent=5 // pred_fallthru
        _
      %p147 = scmp.lt.s32.totalorder %s12, 2
      // Predicated region
      $region13: #{tpu_custom_call.1} parent=5 // pred_check
        %p148 = pneg %p147
      $region14: #{tpu_custom_call.1} parent=5 // pred_check_branch
        %150 = sbr.rel (%p148) target = $region16
      $region15: #{tpu_custom_call.1} parent=5 // pred_region
        // Predicated region
        $region17: #{tpu_custom_call.1} parent=15 // pred_check
          %p151 = pneg %p44
        $region18: #{tpu_custom_call.1} parent=15 // pred_check_branch
          %153 = sbr.rel (%p151) target = $region20
        $region19: #{tpu_custom_call.1} parent=15 // pred_region
          %p154 = scmp.lt.s32.totalorder %s19, 1
          %s155 = scalar_select %p154, %s19, 1
          %s156 = smul.addr %s155, 8
          %s157 = smul.addr %s156, 4
          %s158 = scalar_lea.vmem %s0, %s157
        $region20: #{tpu_custom_call.1} parent=15 // pred_fallthru
          _
        // Predicated region
        $region21: #{tpu_custom_call.1} parent=15 // pred_check
          %p159 = pneg %p72
        $region22: #{tpu_custom_call.1} parent=15 // pred_check_branch
          %161 = sbr.rel (%p159) target = $region24
        $region23: #{tpu_custom_call.1} parent=15 // pred_region
          %p162 = scmp.lt.s32.totalorder %s19, 1
          %s163 = scalar_select %p162, %s19, 1
          %p164 = scmp.lt.s32.totalorder %s20, 0
          %s165 = scalar_select %p164, %s20, 0
          %s166 = smul.addr %s163, 5
          %s167 = sadd.s32 %s165, %s166
          %s168 = smul.addr %s167, 4
          %s169 = scalar_lea.vmem %s1, %s168
        $region24: #{tpu_custom_call.1} parent=15 // pred_fallthru
          _
        // Predicated region
        $region25: #{tpu_custom_call.1} parent=15 // pred_check
          %p170 = pneg %p98
        $region26: #{tpu_custom_call.1} parent=15 // pred_check_branch
          %172 = sbr.rel (%p170) target = $region28
        $region27: #{tpu_custom_call.1} parent=15 // pred_region
          %p173 = scmp.lt.s32.totalorder %s19, 1
          %s174 = scalar_select %p173, %s19, 1
          %s175 = smul.addr %s174, 8
          %s176 = smul.addr %s175, 8
          %s177 = scalar_lea.vmem %s2, %s176
        $region28: #{tpu_custom_call.1} parent=15 // pred_fallthru
          _
      $region16: #{tpu_custom_call.1} parent=5 // pred_fallthru
        _
      %p178 = scmp.le.s32.totalorder 1, %s12
      %p179 = scmp.lt.s32.totalorder %s12, 3
      %p180 = pnand %p178, %p179
      %p181 = pneg %p180
      // Predicated region
      $region29: #{tpu_custom_call.1} parent=5 // pred_check
        _
      $region30: #{tpu_custom_call.1} parent=5 // pred_check_branch
        %183 = sbr.rel (%p180) target = $region32
      $region31: #{tpu_custom_call.1} parent=5 // pred_region
        %s184 = ssub.s32 %s12, 1
        %p185 = scmp.lt.s32.totalorder %s21, 1
        %s186 = scalar_select %p185, %s21, 1
        %s187 = smul.addr %s186, 8
        %s188 = smul.addr %s187, 4
        %s189 = scalar_lea.vmem %s0, %s188
        %p190 = pneg %p50
        %p191 = pneg %p47
        %p192 = scmp.lt.s32.totalorder %s21, 1
        %s193 = scalar_select %p192, %s21, 1
        %p194 = scmp.lt.s32.totalorder %s22, 0
        %s195 = scalar_select %p194, %s22, 0
        %s196 = smul.addr %s193, 5
        %s197 = sadd.s32 %s195, %s196
        %s198 = smul.addr %s197, 4
        %s199 = scalar_lea.vmem %s1, %s198
        %p200 = pneg %p78
        %p201 = pneg %p75
        %p202 = scmp.lt.s32.totalorder %s21, 1
        %s203 = scalar_select %p202, %s21, 1
        %s204 = smul.addr %s203, 8
        %s205 = smul.addr %s204, 8
        %s206 = scalar_lea.vmem %s2, %s205
        %p207 = pneg %p104
        %p208 = pneg %p101
        %p209 = pneg %p132
        %p210 = pneg %p129
        %s211 = sand.u32 %s119, 1
        %s212 = scalar_lea.sflag [#allocation3], %s211
        %s213 = sand.u32 %s119, 1
        %s214 = smul.addr %s213, 32
        %s215 = scalar_lea.vmem [#allocation2], %s214
        %p216 = scmp.lt.s32.totalorder %s21, 1
        %s217 = scalar_select %p216, %s21, 1
        %s218 = smul.addr %s217, 8
        %s219 = smul.addr %s218, 4
        %s220 = scalar_lea.vmem %s0, %s219
        %p221 = scmp.lt.s32.totalorder %s21, 1
        %s222 = scalar_select %p221, %s21, 1
        %p223 = scmp.lt.s32.totalorder %s22, 0
        %s224 = scalar_select %p223, %s22, 0
        %s225 = smul.addr %s222, 5
        %s226 = sadd.s32 %s224, %s225
        %s227 = smul.addr %s226, 4
        %s228 = scalar_lea.vmem %s1, %s227
        %p229 = scmp.lt.s32.totalorder %s21, 1
        %s230 = scalar_select %p229, %s21, 1
        %s231 = smul.addr %s230, 8
        %s232 = smul.addr %s231, 8
        %s233 = scalar_lea.vmem %s2, %s232
        %v235 = vld [vmem:[%s220] sm:$0xf]
        %v236 = vld [vmem:[%s220 + $0x4] sm:$0xf]
        %v237 = vld [vmem:[%s220 + $0x8] sm:$0xf]
        %v238 = vld [vmem:[%s220 + $0xc] sm:$0xf]
        %v239 = vld [vmem:[%s220 + $0x10] sm:$0xf]
        %v240 = vld [vmem:[%s220 + $0x14] sm:$0xf]
        %v241 = vld [vmem:[%s220 + $0x18] sm:$0xf]
        %v242 = vld [vmem:[%s220 + $0x1c] sm:$0xf]
        %v243 = vld [vmem:[%s228] sm:$0xf]
        %v244 = vld [vmem:[%s228 + $0x4] sm:$0xf]
        %v245 = vld [vmem:[%s228 + $0x8] sm:$0xf]
        %v246 = vld [vmem:[%s228 + $0xc] sm:$0xf]
        %v247 = vld [vmem:[%s228 + $0x10] sm:$0x3]
        %v256 = vunpack.c.l.b16 %v235
        %v257 = vunpack.c.l.b16 %v236
        %v258 = vunpack.c.l.b16 %v237
        %v259 = vunpack.c.l.b16 %v238
        %v260 = vunpack.c.l.b16 %v239
        %v261 = vunpack.c.l.b16 %v240
        %v262 = vunpack.c.l.b16 %v241
        %v263 = vunpack.c.l.b16 %v242
        %v264 = vpack.c.b16 %v257, %v256
        %v265 = vpack.c.b16 %v259, %v258
        %v266 = vpack.c.b16 %v261, %v260
        %v267 = vpack.c.b16 %v263, %v262
        %v273 = vunpack.c.l.b16 %v243
        %v274 = vunpack.c.l.b16 %v244
        %v275 = vunpack.c.l.b16 %v245
        %v276 = vunpack.c.l.b16 %v246
        %v277 = vunpack.c.l.b16 %v247
        %v278 = vpack.c.b16 %v274, %v273
        %v279 = vpack.c.b16 %v276, %v275
        %v280 = vpack.c.b16 %v277, %v277
        %vm283 = vcmask 293888
        %v285 = vsel %vm283, %v264, 0
        %v288 = vsel %vm283, %v265, 0
        %v291 = vsel %vm283, %v266, 0
        %v294 = vsel %vm283, %v267, 0
        %vm296 = vcmask 1041408
        %v298 = vsel %vm296, %v280, 0
        %300 = vmatprep.subr.bf16.mxu0 0
        %301 = vmatpush1.bf16.msra.mxu0 0
        %302 = vmatprep.subr.bf16.mxu0 0
        %303 = vmatpush1.bf16.msra.mxu0 0
        %304 = vmatprep.subr.bf16.mxu0 0
        %305 = vmatpush1.bf16.msra.mxu0 0
        %306 = vmatprep.subr.bf16.mxu0 0
        %307 = vmatpush1.bf16.msra.mxu0 0
        %308 = vmatprep.subr.bf16.mxu0 0
        %309 = vmatpush1.bf16.msra.mxu0 0
        %310 = vmatprep.subr.bf16.mxu0 0
        %311 = vmatpush1.bf16.msra.mxu0 %v298
        %312 = vmatprep.subr.bf16.mxu0 0
        %313 = vmatpush1.bf16.msra.mxu0 %v279
        %314 = vmatprep.subr.bf16.mxu0 0
        %315 = vmatpush1.bf16.msra.mxu0 %v278
        %316 = vmatprep.subr.bf16.mxu0 0
        %317 = vmatpush2.bf16.msra.mxu0 0
        %318 = vmatprep.subr.bf16.mxu0 0
        %319 = vmatpush2.bf16.msra.mxu0 0
        %320 = vmatprep.subr.bf16.mxu0 0
        %321 = vmatpush2.bf16.msra.mxu0 0
        %322 = vmatprep.subr.bf16.mxu0 0
        %323 = vmatpush2.bf16.msra.mxu0 0
        %324 = vmatprep.subr.bf16.mxu0 0
        %325 = vmatpush2.bf16.msra.mxu0 0
        %326 = vmatprep.subr.bf16.mxu0 0
        %327 = vmatpush2.bf16.msra.mxu0 0
        %328 = vmatprep.subr.bf16.mxu0 0
        %329 = vmatpush2.bf16.msra.mxu0 0
        %330 = vmatprep.subr.bf16.mxu0 0
        %331 = vmatpush2.bf16.msra.mxu0 0
        %332 = vmatprep.mubr.bf16.mxu0 0
        %333 = vmatmul.mubr.bf16.gmra.mxu0 %v285
        %v334 = vpop.f32.mrf.mxu0
        %v335 = vadd.f32 0.0, %v334
        %v336 = vpop.f32.mrf.mxu0
        %v337 = vpop.f32.mrf.mxu0
        %v338 = vadd.f32 0.0, %v337
        %v339 = vpop.f32.mrf.mxu0
        %340 = vmatprep.mubr.bf16.mxu0 0
        %341 = vmatmul.mubr.bf16.gmra.mxu0 %v288
        %v342 = vpop.f32.mrf.mxu0
        %v343 = vadd.f32 0.0, %v342
        %v344 = vpop.f32.mrf.mxu0
        %v345 = vpop.f32.mrf.mxu0
        %v346 = vadd.f32 0.0, %v345
        %v347 = vpop.f32.mrf.mxu0
        %348 = vmatprep.mubr.bf16.mxu0 0
        %349 = vmatmul.mubr.bf16.gmra.mxu0 %v291
        %v350 = vpop.f32.mrf.mxu0
        %v351 = vadd.f32 0.0, %v350
        %v352 = vpop.f32.mrf.mxu0
        %v353 = vpop.f32.mrf.mxu0
        %v354 = vadd.f32 0.0, %v353
        %v355 = vpop.f32.mrf.mxu0
        %356 = vmatprep.mubr.bf16.mxu0 0
        %357 = vmatmul.mubr.bf16.gmra.mxu0 %v294
        %v358 = vpop.f32.mrf.mxu0
        %v359 = vadd.f32 0.0, %v358
        %v360 = vpop.f32.mrf.mxu0
        %v361 = vpop.f32.mrf.mxu0
        %v362 = vadd.f32 0.0, %v361
        %v363 = vpop.f32.mrf.mxu0
        %364 = vdwg.mxu0
        %v365 = vld [vmem:[%s233] sm:$0xff]
        %v366 = vld [vmem:[%s233 + $0x8] sm:$0xff]
        %v367 = vld [vmem:[%s233 + $0x10] sm:$0xff]
        %v368 = vld [vmem:[%s233 + $0x18] sm:$0xff]
        %v369 = vld [vmem:[%s233 + $0x20] sm:$0xff]
        %v370 = vld [vmem:[%s233 + $0x28] sm:$0xff]
        %v371 = vld [vmem:[%s233 + $0x30] sm:$0xff]
        %v372 = vld [vmem:[%s233 + $0x38] sm:$0xff]
        %374 = vset.pattern.permute.xlu0 0
        %375 = vperm.xlu0 %374, %v365
        %v376 = vpop.permute.xlu0 %375
        %379 = vset.pattern.permute.xlu0 0
        %380 = vperm.xlu0 %379, %v366
        %v381 = vpop.permute.xlu0 %380
        %384 = vset.pattern.permute.xlu0 0
        %385 = vperm.xlu0 %384, %v367
        %v386 = vpop.permute.xlu0 %385
        %389 = vset.pattern.permute.xlu0 0
        %390 = vperm.xlu0 %389, %v368
        %v391 = vpop.permute.xlu0 %390
        %394 = vset.pattern.permute.xlu0 0
        %395 = vperm.xlu0 %394, %v369
        %v396 = vpop.permute.xlu0 %395
        %399 = vset.pattern.permute.xlu0 0
        %400 = vperm.xlu0 %399, %v370
        %v401 = vpop.permute.xlu0 %400
        %404 = vset.pattern.permute.xlu0 0
        %405 = vperm.xlu0 %404, %v371
        %v406 = vpop.permute.xlu0 %405
        %409 = vset.pattern.permute.xlu0 0
        %410 = vperm.xlu0 %409, %v372
        %v411 = vpop.permute.xlu0 %410
        %v413 = vmul.f32 %v335, %v376
        %v414 = vmul.f32 %v338, %v381
        %v415 = vmul.f32 %v343, %v386
        %v416 = vmul.f32 %v346, %v391
        %v417 = vmul.f32 %v351, %v396
        %v418 = vmul.f32 %v354, %v401
        %v419 = vmul.f32 %v359, %v406
        %v420 = vmul.f32 %v362, %v411
        %v421 = vpack.c.bf16 %v414, %v413
        %v422 = vpack.c.bf16 %v416, %v415
        %v423 = vpack.c.bf16 %v418, %v417
        %v424 = vpack.c.bf16 %v420, %v419
        %v429 = vunpack.c.l.b16 %v421
        %v430 = vunpack.c.h.b16 %v421
        %v431 = vunpack.c.l.b16 %v422
        %v432 = vunpack.c.h.b16 %v422
        %v433 = vunpack.c.l.b16 %v423
        %v434 = vunpack.c.h.b16 %v423
        %v435 = vunpack.c.l.b16 %v424
        %v436 = vunpack.c.h.b16 %v424
        %v437 = vpack.c.b16 %v429, %v429
        %v438 = vpack.c.b16 %v430, %v430
        %v439 = vpack.c.b16 %v431, %v431
        %v440 = vpack.c.b16 %v432, %v432
        %v441 = vpack.c.b16 %v433, %v433
        %v442 = vpack.c.b16 %v434, %v434
        %v443 = vpack.c.b16 %v435, %v435
        %v444 = vpack.c.b16 %v436, %v436
        %453 = vst [vmem:[%s215] sm:$0xf] %v437
        %454 = vst [vmem:[%s215 + $0x4] sm:$0xf] %v438
        %455 = vst [vmem:[%s215 + $0x8] sm:$0xf] %v439
        %456 = vst [vmem:[%s215 + $0xc] sm:$0xf] %v440
        %457 = vst [vmem:[%s215 + $0x10] sm:$0xf] %v441
        %458 = vst [vmem:[%s215 + $0x14] sm:$0xf] %v442
        %459 = vst [vmem:[%s215 + $0x18] sm:$0xf] %v443
        %460 = vst [vmem:[%s215 + $0x1c] sm:$0xf] %v444
        %s461 = sand.u32 %s119, 1
        %s462 = scalar_lea.sflag [#allocation3], %s461
        %s463 = sand.u32 %s119, 1
        %s464 = smul.addr %s463, 32
        %s465 = scalar_lea.vmem [#allocation2], %s464
        // Predicated region
        $region33: #{tpu_custom_call.1} parent=31 // pred_check
          %p466 = pneg %p129
        $region34: #{tpu_custom_call.1} parent=31 // pred_check_branch
          %468 = sbr.rel (%p466) target = $region36
        $region35: #{tpu_custom_call.1} parent=31 // pred_region
          %s470 = ssub.s32 512, 512
          %471 = vsyncadd %s462, %s470
          %s472 = smul.addr %s21, 8
          %s473 = sadd.s32 %s22, %s472
          %s474 = smul.addr %s473, 64
          %s475 = scalar_lea.hbm %s3, %s474
          %s476 = sshll.u32 %s465, 4
          %s477 = int_to_ptr.vmem [resolvable:$true] %s476
          %482 = dma.vmem_to_hbm [thread:$0]  %s477, 512, %s475, %s462, 64, 64, 4
        $region36: #{tpu_custom_call.1} parent=31 // pred_fallthru
          _
      $region32: #{tpu_custom_call.1} parent=5 // pred_fallthru
        _
      %p483 = scmp.le.s32.totalorder 2, %s12
      // Predicated region
      $region37: #{tpu_custom_call.1} parent=5 // pred_check
        %p484 = pneg %p483
      $region38: #{tpu_custom_call.1} parent=5 // pred_check_branch
        %486 = sbr.rel (%p484) target = $region40
      $region39: #{tpu_custom_call.1} parent=5 // pred_region
        %s487 = ssub.s32 %s12, 2
        // Predicated region
        $region41: #{tpu_custom_call.1} parent=39 // pred_check
          %p488 = pneg %p135
        $region42: #{tpu_custom_call.1} parent=39 // pred_check_branch
          %490 = sbr.rel (%p488) target = $region44
        $region43: #{tpu_custom_call.1} parent=39 // pred_region
          %s491 = sand.u32 %s120, 1
          %s492 = scalar_lea.sflag [#allocation3], %s491
          %s493 = sand.u32 %s120, 1
          %s494 = smul.addr %s493, 32
          %s495 = scalar_lea.vmem [#allocation2], %s494
          %496 = dma.done %s492, 512
        $region44: #{tpu_custom_call.1} parent=39 // pred_fallthru
          _
      $region40: #{tpu_custom_call.1} parent=5 // pred_fallthru
        _
    $region6: #{tpu_custom_call.1} parent=1 // loop_footer
      %s16 = sadd.s32 1, %s12
    $region7: #{tpu_custom_call.1} parent=1 // loop_footer_branch
      %11 = sbr.rel target = $region3
    $region8: #{tpu_custom_call.1} parent=1 // loop_exit
      _
    %497 = vsyncpa [#allocation3], 1
    %s498 = scalar_lea.sflag [#allocation3], 1
    %499 = vsyncpa %s498, 1

</llo_original>
